<compile_context>
chip_gen: v5e
topology: v5e:2x2
jax: 0.10.0
libtpu: 0.0.40
codegen_flags: <defaults>
</compile_context>

<pallas_src>
import functools

import jax
import jax.numpy as jnp
import numpy as np
from jax.experimental import pallas as pl
from jax.experimental.pallas import tpu as pltpu


# ---------------------------------------------------------------------------
# Filter construction (NumPy port of sg2_modules.make_kernel)
# ---------------------------------------------------------------------------
def make_kernel(k):
    k = np.asarray(k, dtype=np.float32)
    if k.ndim == 1:
        k = k[None, :] * k[:, None]
    k = k / k.sum()
    return k


# ---------------------------------------------------------------------------
# In-kernel padding helpers (fused zero / replicate pad, no HBM round trip)
# ---------------------------------------------------------------------------
def _extend_w(x, p_l, p_r, replicate):
    """Pad the last (lane) axis of a (P, H, W) block by (p_l, p_r)."""
    if p_l == 0 and p_r == 0:
        return x
    P, H, W = x.shape
    parts = []
    if p_l:
        left = (jnp.broadcast_to(x[:, :, :1], (P, H, p_l)) if replicate
                else jnp.zeros((P, H, p_l), x.dtype))
        parts.append(left)
    parts.append(x)
    if p_r:
        right = (jnp.broadcast_to(x[:, :, W - 1:], (P, H, p_r)) if replicate
                 else jnp.zeros((P, H, p_r), x.dtype))
        parts.append(right)
    return jnp.concatenate(parts, axis=-1)


def _extend_h(x, p_t, p_b, replicate):
    """Pad the sublane axis of a (P, H, W) block by (p_t, p_b)."""
    if p_t == 0 and p_b == 0:
        return x
    P, H, W = x.shape
    parts = []
    if p_t:
        top = (jnp.broadcast_to(x[:, :1, :], (P, p_t, W)) if replicate
               else jnp.zeros((P, p_t, W), x.dtype))
        parts.append(top)
    parts.append(x)
    if p_b:
        bot = (jnp.broadcast_to(x[:, H - 1:, :], (P, p_b, W)) if replicate
               else jnp.zeros((P, p_b, W), x.dtype))
        parts.append(bot)
    return jnp.concatenate(parts, axis=1)


# ---------------------------------------------------------------------------
# Kernel bodies
# ---------------------------------------------------------------------------
def _blur_sep_kernel(x_ref, o_ref, *, h_taps, v_taps, p_l, p_r, p_t, p_b,
                     replicate):
    """Separable FIR: horizontal kw-tap pass then vertical kh-tap pass."""
    _, h_out, w_out = o_ref.shape

    # ---- horizontal pass (lane direction), pad fused as border strips ----
    xw = _extend_w(x_ref[...], p_l, p_r, replicate)        # native dtype
    th = None
    for j, t in enumerate(h_taps):
        if t == 0.0:
            continue
        # Static lane-offset slice (small j) -> XLU lane shift; per-tap upcast
        # keeps bf16 working sets half-size.  f32 accumulation throughout.
        c = t * xw[:, :, j:j + w_out].astype(jnp.float32)
        th = c if th is None else th + c
    if th is None:
        th = jnp.zeros((xw.shape[0], xw.shape[1], w_out), jnp.float32)

    # ---- vertical pass (sublane direction), pad fused as border rows ----
    thp = _extend_h(th, p_t, p_b, replicate)                # f32
    out = None
    for i, t in enumerate(v_taps):
        if t == 0.0:
            continue
        c = t * thp[:, i:i + h_out, :]
        out = c if out is None else out + c
    if out is None:
        out = jnp.zeros(o_ref.shape, jnp.float32)
    o_ref[...] = out.astype(o_ref.dtype)


def _blur_2d_kernel(x_ref, o_ref, *, taps, p_l, p_r, p_t, p_b, replicate):
    """Fallback for genuinely 2-D (non rank-1) filter kernels."""
    _, h_out, w_out = o_ref.shape
    xp = _extend_h(_extend_w(x_ref[...], p_l, p_r, replicate),
                   p_t, p_b, replicate)                     # native dtype
    out = None
    for i, row in enumerate(taps):
        for j, t in enumerate(row):
            if t == 0.0:
                continue
            c = t * xp[:, i:i + h_out, j:j + w_out].astype(jnp.float32)
            out = c if out is None else out + c
    if out is None:
        out = jnp.zeros(o_ref.shape, jnp.float32)
    o_ref[...] = out.astype(o_ref.dtype)


# ---------------------------------------------------------------------------
# Tiling / VMEM sizing
# ---------------------------------------------------------------------------
def _vmem_capacity_bytes():
    try:
        cap = int(pltpu.get_tpu_info().vmem_capacity_bytes)
        if cap > 0:
            return cap
    except Exception:
        pass
    return 64 * 1024 * 1024          # conservative (v7x-sized) fallback


def _pick_tile_p(bc, per_plane_bytes, budget_bytes, min_steps=4):
    """Largest divisor of bc within the VMEM budget, keeping >= min_steps grid
    steps (double-buffering + 2 TensorCores on v7x) whenever bc allows it."""
    cap = max(1, budget_bytes // max(per_plane_bytes, 1))
    if bc >= min_steps:
        cap = min(cap, bc // min_steps)
    tile = 1
    for d in range(1, bc + 1):
        if bc % d == 0 and d <= cap:
            tile = d
    return tile


# ---------------------------------------------------------------------------
# Public forward
# ---------------------------------------------------------------------------
def blur_forward(x, kernel, pad, upsample_factor=1, replicate_pad=False):
    """Forward pass of sg2_modules.Blur.  x: (B, C, H, W)."""
    k_in = np.asarray(kernel, dtype=np.float32)
    scale = float(upsample_factor) ** 2 if upsample_factor > 1 else 1.0

    separable = (k_in.ndim == 1)
    if separable:
        base = k_in / k_in.sum()        # make_kernel(k) == outer(base, base)
        kh = kw = int(base.shape[0])
        # upfirdn2d convolves with the flipped kernel (true convolution); the
        # upsample_factor**2 scaling is folded into the horizontal factor.
        h_taps = tuple(float(v) for v in (base[::-1] * scale))
        v_taps = tuple(float(v) for v in base[::-1])
    else:
        k2d = make_kernel(k_in) * scale
        kh, kw = k2d.shape
        taps2d = tuple(tuple(float(k2d[kh - 1 - i, kw - 1 - j])
                             for j in range(kw)) for i in range(kh))

    B, C, H, W = x.shape

    if replicate_pad:
        if isinstance(pad, (tuple, list)) and len(pad) == 2:
            p_l, p_r, p_t, p_b = (int(pad[0]), int(pad[1]),
                                  int(pad[0]), int(pad[1]))
        else:
            p_l = p_r = p_t = p_b = int(pad)
        assert min(p_l, p_r, p_t, p_b) >= 0, "replicate pad must be >= 0"
        replicate = True
    else:
        if isinstance(pad, (tuple, list)):
            p0, p1 = int(pad[0]), int(pad[1])
        else:
            p0 = p1 = int(pad)
        p_t, p_b, p_l, p_r = p0, p1, p0, p1
        replicate = False
        if min(p_t, p_b, p_l, p_r) < 0:
            # Negative pads in upfirdn2d are crops: apply them in the wrapper.
            ct, cb = max(-p_t, 0), max(-p_b, 0)
            cl, cr = max(-p_l, 0), max(-p_r, 0)
            x = x[:, :, ct:H - cb, cl:W - cr]
            H -= ct + cb
            W -= cl + cr
            p_t, p_b, p_l, p_r = (max(p_t, 0), max(p_b, 0),
                                  max(p_l, 0), max(p_r, 0))

    Hp, Wp = H + p_t + p_b, W + p_l + p_r
    Ho, Wo = Hp - kh + 1, Wp - kw + 1
    assert Ho >= 1 and Wo >= 1, "blur output would be empty"

    bc = B * C
    x_flat = x.reshape(bc, H, W)
    isz = x.dtype.itemsize

    # Per-plane VMEM footprint: double-buffered I/O blocks + padded strips +
    # f32 intermediates (horizontal result, vertical-pad copy, f32 output).
    if separable:
        per_plane = (2 * H * W * isz + 2 * Ho * Wo * isz + H * Wp * isz
                     + 4 * (H * Wo + Hp * Wo + 2 * Ho * Wo))
    else:
        per_plane = (2 * H * W * isz + 2 * Ho * Wo * isz
                     + 2 * Hp * Wp * isz + 4 * 2 * Ho * Wo)

    vmem_cap = _vmem_capacity_bytes()                 # 128 MiB v5e/v6e, 64 v7x
    budget = max(16 * 1024 * 1024, (vmem_cap * 2) // 5)
    vmem_limit = max(32 * 1024 * 1024,
                     min((vmem_cap * 3) // 4, 100 * 1024 * 1024))
    tile_p = _pick_tile_p(bc, per_plane, budget, min_steps=4)
    # TODO(synk): planes too large for a single block (>~2048^2 f32 on v7x)
    # would need an H-strip grid axis with a (kh-1)-row halo.
    # TODO(synk): for Wo < 128 layers, pack 128 // Wp planes side-by-side along
    # the lane axis (using the zero pad as separator) for lane-dense stores.

    if separable:
        kern = functools.partial(_blur_sep_kernel, h_taps=h_taps,
                                 v_taps=v_taps, p_l=p_l, p_r=p_r,
                                 p_t=p_t, p_b=p_b, replicate=replicate)
    else:
        kern = functools.partial(_blur_2d_kernel, taps=taps2d, p_l=p_l,
                                 p_r=p_r, p_t=p_t, p_b=p_b,
                                 replicate=replicate)

    out_flat = pl.pallas_call(
        kern,
        out_shape=jax.ShapeDtypeStruct((bc, Ho, Wo), x.dtype),
        grid=(bc // tile_p,),
        in_specs=[pl.BlockSpec((tile_p, H, W), lambda p: (p, 0, 0))],
        out_specs=pl.BlockSpec((tile_p, Ho, Wo), lambda p: (p, 0, 0)),
        compiler_params=pltpu.CompilerParams(
            dimension_semantics=("parallel",),
            vmem_limit_bytes=int(vmem_limit)),
    )(x_flat)

    return out_flat.reshape(B, C, Ho, Wo)


# ---------------------------------------------------------------------------
# Pure-JAX reference (independent of the kernel) and self-test
# ---------------------------------------------------------------------------
def blur_reference(x, kernel, pad, upsample_factor=1, replicate_pad=False):
    """Independent pure-JAX (lax.conv) reference of Blur.forward."""
    k2d = jnp.asarray(make_kernel(kernel))
    if upsample_factor > 1:
        k2d = k2d * (upsample_factor ** 2)
    B, C, H, W = x.shape
    if replicate_pad:
        if isinstance(pad, (tuple, list)) and len(pad) == 2:
            p_l, p_r, p_t, p_b = (int(pad[0]), int(pad[1]),
                                  int(pad[0]), int(pad[1]))
        else:
            p_l = p_r = p_t = p_b = int(pad)
        xp = jnp.pad(x, ((0, 0), (0, 0), (p_t, p_b), (p_l, p_r)), mode="edge")
    else:
        if isinstance(pad, (tuple, list)):
            p0, p1 = int(pad[0]), int(pad[1])
        else:
            p0 = p1 = int(pad)
        xp = jnp.pad(x, ((0, 0), (0, 0), (max(p0, 0), max(p1, 0)),
                         (max(p0, 0), max(p1, 0))))
        hh, ww = xp.shape[2], xp.shape[3]
        xp = xp[:, :, max(-p0, 0):hh - max(-p1, 0),
                max(-p0, 0):ww - max(-p1, 0)]
    w = jnp.flip(k2d, (0, 1))[None, None].astype(x.dtype)       # (1,1,kh,kw)
    w = jnp.tile(w, (C, 1, 1, 1))                                # depthwise
    return jax.lax.conv_general_dilated(
        xp, w, window_strides=(1, 1), padding="VALID",
        dimension_numbers=("NCHW", "OIHW", "NCHW"),
        feature_group_count=C, precision=jax.lax.Precision.HIGHEST)


if __name__ == "__main__":
    B, C, H, W = 2, 4, 16, 16
    x = jax.random.normal(jax.random.PRNGKey(0), (B, C, H, W), jnp.float32)

    # Case 1: standard StyleGAN2 blur — separable 1-D kernel, asymmetric zero
    # pad fused in-kernel.
    out1 = jax.block_until_ready(blur_forward(x, [1, 3, 3, 1], pad=(2, 1)))
    ref1 = blur_reference(x, [1, 3, 3, 1], pad=(2, 1))
    np.testing.assert_allclose(np.asarray(out1), np.asarray(ref1),
                               rtol=1e-4, atol=1e-4)

    # Case 2: replicate padding (fused in-kernel) + upsample_factor scaling.
    out2 = jax.block_until_ready(
        blur_forward(x, [1, 2, 1], pad=1, upsample_factor=2,
                     replicate_pad=True))
    ref2 = blur_reference(x, [1, 2, 1], pad=1, upsample_factor=2,
                          replicate_pad=True)
    np.testing.assert_allclose(np.asarray(out2), np.asarray(ref2),
                               rtol=1e-4, atol=1e-4)

    # Case 3: explicit non-separable 2-D kernel (fallback path).
    k2 = [[0.0, 1.0, 0.0], [1.0, 2.0, 1.0], [0.0, 1.0, 0.0]]
    out3 = jax.block_until_ready(blur_forward(x, k2, pad=(1, 1)))
    ref3 = blur_reference(x, k2, pad=(1, 1))
    np.testing.assert_allclose(np.asarray(out3), np.asarray(ref3),
                               rtol=1e-4, atol=1e-4)

    print("KERNEL_OK")
</pallas_src>

<mosaic_0001>
module attributes {stable_mosaic.version = 11 : i64} {
  func.func @_blur_sep_kernel(%arg0: i32, %arg1: memref<2x16x16xf32, #tpu.memory_space<vmem>>, %arg2: memref<2x16x16xf32, #tpu.memory_space<vmem>>) attributes {dimension_semantics = [#tpu.dimension_semantics<parallel>], iteration_bounds = array<i64: 4>, scalar_prefetch = 0 : i64, scratch_operands = 0 : i64, tpu.core_type = #tpu.core_type<tc>, window_params = [{transform_indices = @transform_0, window_bounds = array<i64: 2, 16, 16>}, {transform_indices = @transform_1, window_bounds = array<i64: 2, 16, 16>}]} {
    %c0 = arith.constant 0 : index
    %c0_0 = arith.constant 0 : index
    %c0_1 = arith.constant 0 : index
    %0 = vector.load %arg1[%c0, %c0_0, %c0_1] : memref<2x16x16xf32, #tpu.memory_space<vmem>>, vector<2x16x16xf32>
    %cst = arith.constant 0.000000e+00 : f32
    %1 = vector.broadcast %cst : f32 to vector<2x16x2xf32>
    %cst_2 = arith.constant 0.000000e+00 : f32
    %2 = vector.broadcast %cst_2 : f32 to vector<2x16x1xf32>
    %3 = tpu.concatenate %1, %0, %2 in 2 : vector<2x16x2xf32>, vector<2x16x16xf32>, vector<2x16x1xf32> -> vector<2x16x19xf32>
    %4 = vector.extract_strided_slice %3 {offsets = [0, 0, 0], sizes = [2, 16, 16], strides = [1, 1, 1]} : vector<2x16x19xf32> to vector<2x16x16xf32>
    %cst_3 = arith.constant 1.250000e-01 : f32
    %5 = vector.broadcast %cst_3 : f32 to vector<2x16x16xf32>
    %6 = arith.mulf %5, %4 : vector<2x16x16xf32>
    %7 = vector.extract_strided_slice %3 {offsets = [0, 0, 1], sizes = [2, 16, 16], strides = [1, 1, 1]} : vector<2x16x19xf32> to vector<2x16x16xf32>
    %cst_4 = arith.constant 3.750000e-01 : f32
    %8 = vector.broadcast %cst_4 : f32 to vector<2x16x16xf32>
    %9 = arith.mulf %8, %7 : vector<2x16x16xf32>
    %10 = arith.addf %6, %9 : vector<2x16x16xf32>
    %11 = vector.extract_strided_slice %3 {offsets = [0, 0, 2], sizes = [2, 16, 16], strides = [1, 1, 1]} : vector<2x16x19xf32> to vector<2x16x16xf32>
    %cst_5 = arith.constant 3.750000e-01 : f32
    %12 = vector.broadcast %cst_5 : f32 to vector<2x16x16xf32>
    %13 = arith.mulf %12, %11 : vector<2x16x16xf32>
    %14 = arith.addf %10, %13 : vector<2x16x16xf32>
    %15 = vector.extract_strided_slice %3 {offsets = [0, 0, 3], sizes = [2, 16, 16], strides = [1, 1, 1]} : vector<2x16x19xf32> to vector<2x16x16xf32>
    %cst_6 = arith.constant 1.250000e-01 : f32
    %16 = vector.broadcast %cst_6 : f32 to vector<2x16x16xf32>
    %17 = arith.mulf %16, %15 : vector<2x16x16xf32>
    %18 = arith.addf %14, %17 : vector<2x16x16xf32>
    %cst_7 = arith.constant 0.000000e+00 : f32
    %19 = vector.broadcast %cst_7 : f32 to vector<2x2x16xf32>
    %cst_8 = arith.constant 0.000000e+00 : f32
    %20 = vector.broadcast %cst_8 : f32 to vector<2x1x16xf32>
    %21 = tpu.concatenate %19, %18, %20 in 1 : vector<2x2x16xf32>, vector<2x16x16xf32>, vector<2x1x16xf32> -> vector<2x19x16xf32>
    %22 = vector.extract_strided_slice %21 {offsets = [0, 0, 0], sizes = [2, 16, 16], strides = [1, 1, 1]} : vector<2x19x16xf32> to vector<2x16x16xf32>
    %cst_9 = arith.constant 1.250000e-01 : f32
    %23 = vector.broadcast %cst_9 : f32 to vector<2x16x16xf32>
    %24 = arith.mulf %23, %22 : vector<2x16x16xf32>
    %25 = vector.extract_strided_slice %21 {offsets = [0, 1, 0], sizes = [2, 16, 16], strides = [1, 1, 1]} : vector<2x19x16xf32> to vector<2x16x16xf32>
    %cst_10 = arith.constant 3.750000e-01 : f32
    %26 = vector.broadcast %cst_10 : f32 to vector<2x16x16xf32>
    %27 = arith.mulf %26, %25 : vector<2x16x16xf32>
    %28 = arith.addf %24, %27 : vector<2x16x16xf32>
    %29 = vector.extract_strided_slice %21 {offsets = [0, 2, 0], sizes = [2, 16, 16], strides = [1, 1, 1]} : vector<2x19x16xf32> to vector<2x16x16xf32>
    %cst_11 = arith.constant 3.750000e-01 : f32
    %30 = vector.broadcast %cst_11 : f32 to vector<2x16x16xf32>
    %31 = arith.mulf %30, %29 : vector<2x16x16xf32>
    %32 = arith.addf %28, %31 : vector<2x16x16xf32>
    %33 = vector.extract_strided_slice %21 {offsets = [0, 3, 0], sizes = [2, 16, 16], strides = [1, 1, 1]} : vector<2x19x16xf32> to vector<2x16x16xf32>
    %cst_12 = arith.constant 1.250000e-01 : f32
    %34 = vector.broadcast %cst_12 : f32 to vector<2x16x16xf32>
    %35 = arith.mulf %34, %33 : vector<2x16x16xf32>
    %36 = arith.addf %32, %35 : vector<2x16x16xf32>
    %c0_13 = arith.constant 0 : index
    %c0_14 = arith.constant 0 : index
    %c0_15 = arith.constant 0 : index
    %37 = vector.load %arg2[%c0_13, %c0_14, %c0_15] : memref<2x16x16xf32, #tpu.memory_space<vmem>>, vector<2x16x16xf32>
    tpu.vector_store %arg2[%c0_13, %c0_14, %c0_15], %36 {strides = array<i32>} : memref<2x16x16xf32, #tpu.memory_space<vmem>>, vector<2x16x16xf32>,
    return
  }
  func.func @transform_0(%arg0: i32) -> (i32, i32, i32) {
    %c0_i32 = arith.constant 0 : i32
    %c0_i32_0 = arith.constant 0 : i32
    %c0_i32_1 = arith.constant 0 : i32
    return %arg0, %c0_i32, %c0_i32_0 : i32, i32, i32
  }
  func.func @transform_1(%arg0: i32) -> (i32, i32, i32) {
    %c0_i32 = arith.constant 0 : i32
    %c0_i32_0 = arith.constant 0 : i32
    %c0_i32_1 = arith.constant 0 : i32
    return %arg0, %c0_i32, %c0_i32_0 : i32, i32, i32
  }
}

</mosaic_0001>

<llo_original>
// kernel: tpu_custom_call.1
$region0: #{tpu_custom_call.1}
  #allocation0 [shape = 'u32[]', space=smem, size = 0x4, offset = 0x4, fixed_abs, tag = 'smem constant byte address 0x4 - core index']
  #allocation1 [shape = 'u32[72,128]{1,0:T(1,128)}', space=vmem, size = 0x9000, scoped, tag = 'internal scratch']
  %s0 = inlined_call_operand.hbm [shape: f32[8,16,16], index: 0, kind: input, shape index: {}]
  %s1 = inlined_call_operand.hbm [shape: f32[8,16,16], index: 1, kind: output, shape index: {}]
  %s2 = sld [smem:[#allocation0]]
  $region41: #{tpu_custom_call.1} parent=0
    _
  %s4 = ssub.s32 1, %s2
  %s5 = scalar_select 0, %s4, %s2
  $region1: #{tpu_custom_call.1} parent=0
    #allocation2 [shape = 'u8[32768]{0}', space=vmem, size = 0x8000, scoped, tag = 'input window, operand 0']
    #allocation3 [shape = 's32[2]{0}', space=sflag, size = 0x8, scoped, tag = 'scoped memory for tpu_custom_call.1']
    #allocation4 [shape = 's32[2]{0}', space=sflag, size = 0x8, scoped, tag = 'scoped memory for tpu_custom_call.1']
    #allocation5 [shape = 'u8[32768]{0}', space=vmem, size = 0x8000, scoped, tag = 'output window, operand 0']
    %6 = vsyncpa [#allocation3], 0
    %s7 = scalar_lea.sflag [#allocation3], 1
    %8 = vsyncpa %s7, 0
    %9 = vsyncpa [#allocation4], 0
    %s10 = scalar_lea.sflag [#allocation4], 1
    %11 = vsyncpa %s10, 0
    loop: start=0, step=1, limit=6
    $region2: #{tpu_custom_call.1} parent=1 // loop_pre_header
      _
    $region3: #{tpu_custom_call.1} parent=1 // loop_header
      %s13 = sphi 0, %s17
      %p14 = scmp.ge.s32.totalorder %s13, 6
      %s23 = sphi 0, %s25
      %s26 = sphi 0, %s23
      %s27 = sphi 0, %s26
      %s43 = sphi 0, %s27
      %s49 = sphi 0, %s51
      %s52 = sphi 0, %s49
      %s53 = sphi 0, %s52
      %s69 = sphi 0, %s53
    $region4: #{tpu_custom_call.1} parent=1 // loop_header_branch
      %16 = sbr.rel (%p14) target = $region8
    $region5: #{tpu_custom_call.1} parent=1 // loop_body
      %s18 = ssub.s32 %s13, 1
      %s19 = ssub.s32 %s13, 2
      %s20 = sadd.s32 %s13, 1
      %s21 = ssub.s32 %s13, %s20
      %p22 = scmp.eq.s32.totalorder %s21, 0
      %s24 = sadd.s32 %s23, 1
      %s25 = scalar_select %p22, %s23, %s24
      %p28 = pneg %p22
      %p29 = scmp.eq.s32.totalorder %s13, 3
      %p30 = por %p28, %p29
      %p31 = scmp.ne.s32.totalorder %s23, %s26
      %p32 = scmp.eq.s32.totalorder %s13, 0
      %p33 = por %p31, %p32
      %p34 = scmp.ne.s32.totalorder %s23, %s26
      %p35 = scmp.eq.s32.totalorder %s18, 3
      %p36 = por %p34, %p35
      %p37 = scmp.ne.s32.totalorder %s26, %s27
      %p38 = scmp.eq.s32.totalorder %s18, 0
      %p39 = por %p37, %p38
      %p40 = scmp.ne.s32.totalorder %s26, %s27
      %p41 = scmp.eq.s32.totalorder %s19, 3
      %p42 = por %p40, %p41
      %p44 = scmp.ne.s32.totalorder %s27, %s43
      %p45 = scmp.eq.s32.totalorder %s19, 0
      %p46 = por %p44, %p45
      %s47 = ssub.s32 %s13, %s20
      %p48 = scmp.eq.s32.totalorder %s47, 0
      %s50 = sadd.s32 %s49, 1
      %s51 = scalar_select %p48, %s49, %s50
      %p54 = pneg %p48
      %p55 = scmp.eq.s32.totalorder %s13, 3
      %p56 = por %p54, %p55
      %p57 = scmp.ne.s32.totalorder %s49, %s52
      %p58 = scmp.eq.s32.totalorder %s13, 0
      %p59 = por %p57, %p58
      %p60 = scmp.ne.s32.totalorder %s49, %s52
      %p61 = scmp.eq.s32.totalorder %s18, 3
      %p62 = por %p60, %p61
      %p63 = scmp.ne.s32.totalorder %s52, %s53
      %p64 = scmp.eq.s32.totalorder %s18, 0
      %p65 = por %p63, %p64
      %p66 = scmp.ne.s32.totalorder %s52, %s53
      %p67 = scmp.eq.s32.totalorder %s19, 3
      %p68 = por %p66, %p67
      %p70 = scmp.ne.s32.totalorder %s53, %s69
      %p71 = scmp.eq.s32.totalorder %s19, 0
      %p72 = por %p70, %p71
      %p73 = scmp.le.s32.totalorder 1, %s13
      %p74 = scmp.lt.s32.totalorder %s13, 5
      %p75 = pnand %p73, %p74
      %p76 = pneg %p75
      // Predicated region
      $region9: #{tpu_custom_call.1} parent=5 // pred_check
        _
      $region10: #{tpu_custom_call.1} parent=5 // pred_check_branch
        %78 = sbr.rel (%p75) target = $region12
      $region11: #{tpu_custom_call.1} parent=5 // pred_region
        %s79 = ssub.s32 %s13, 1
      $region12: #{tpu_custom_call.1} parent=5 // pred_fallthru
        _
      %p80 = scmp.lt.s32.totalorder %s13, 4
      // Predicated region
      $region13: #{tpu_custom_call.1} parent=5 // pred_check
        %p81 = pneg %p80
      $region14: #{tpu_custom_call.1} parent=5 // pred_check_branch
        %83 = sbr.rel (%p81) target = $region16
      $region15: #{tpu_custom_call.1} parent=5 // pred_region
        // Predicated region
        $region17: #{tpu_custom_call.1} parent=15 // pred_check
          %p84 = pneg %p33
        $region18: #{tpu_custom_call.1} parent=15 // pred_check_branch
          %86 = sbr.rel (%p84) target = $region20
        $region19: #{tpu_custom_call.1} parent=15 // pred_region
          %s87 = sand.u32 %s23, 1
          %s88 = scalar_lea.sflag [#allocation3], %s87
          %s89 = sand.u32 %s23, 1
          %s90 = smul.addr %s89, 32
          %s91 = scalar_lea.vmem [#allocation2], %s90
          %s92 = smul.u32 2, %s13
          %94 = vsyncadd %s88, 0
          %s95 = smul.addr %s92, 2
          %s96 = smul.addr %s95, 8
          %s97 = scalar_lea.hbm %s0, %s96
          %s98 = sshll.u32 %s97, 4
          %s99 = int_to_ptr.hbm [resolvable:$true] %s98
          %s100 = sshll.u32 %s91, 4
          %s101 = int_to_ptr.vmem [resolvable:$true] %s100
          %106 = dma.hbm_to_vmem [thread:$0]  %s99, 512, %s101, %s88, 128, 128, 8
        $region20: #{tpu_custom_call.1} parent=15 // pred_fallthru
          _
      $region16: #{tpu_custom_call.1} parent=5 // pred_fallthru
        _
      %p107 = scmp.le.s32.totalorder 1, %s13
      %p108 = scmp.lt.s32.totalorder %s13, 5
      %p109 = pnand %p107, %p108
      %p110 = pneg %p109
      // Predicated region
      $region21: #{tpu_custom_call.1} parent=5 // pred_check
        _
      $region22: #{tpu_custom_call.1} parent=5 // pred_check_branch
        %112 = sbr.rel (%p109) target = $region24
      $region23: #{tpu_custom_call.1} parent=5 // pred_region
        %s113 = ssub.s32 %s13, 1
        %s114 = sand.u32 %s26, 1
        %s115 = scalar_lea.sflag [#allocation3], %s114
        %s116 = sand.u32 %s26, 1
        %s117 = smul.addr %s116, 32
        %s118 = scalar_lea.vmem [#allocation2], %s117
        // Predicated region
        $region25: #{tpu_custom_call.1} parent=23 // pred_check
          %p119 = pneg %p39
        $region26: #{tpu_custom_call.1} parent=23 // pred_check_branch
          %121 = sbr.rel (%p119) target = $region28
        $region27: #{tpu_custom_call.1} parent=23 // pred_region
          %123 = dma.done %s115, 512
        $region28: #{tpu_custom_call.1} parent=23 // pred_fallthru
          _
        %s124 = sand.u32 %s26, 1
        %s125 = scalar_lea.sflag [#allocation3], %s124
        %s126 = sand.u32 %s26, 1
        %s127 = smul.addr %s126, 32
        %s128 = scalar_lea.vmem [#allocation2], %s127
        %p129 = pneg %p39
        %p130 = pneg %p36
        %p131 = pneg %p65
        %p132 = pneg %p62
        %s133 = sand.u32 %s52, 1
        %s134 = scalar_lea.sflag [#allocation4], %s133
        %s135 = sand.u32 %s52, 1
        %s136 = smul.addr %s135, 32
        %s137 = scalar_lea.vmem [#allocation5], %s136
        %s138 = smul.u32 2, %s18
        %s139 = smul.u32 2, %s18
        %v140 = vld [vmem:[%s118] sm:$0xff]
        %v141 = vld [vmem:[%s118 + $0x8] sm:$0xff]
        %v142 = vld [vmem:[%s118 + $0x10] sm:$0xff]
        %v143 = vld [vmem:[%s118 + $0x18] sm:$0xff]
        %148 = vrot.lane.b32.xlu0 %v140, 2
        %v149 = vpop.permute.xlu0 %148
        %150 = vrot.lane.b32.xlu0 %v141, 2
        %v151 = vpop.permute.xlu0 %150
        %152 = vrot.lane.b32.xlu0 %v142, 2
        %v153 = vpop.permute.xlu0 %152
        %154 = vrot.lane.b32.xlu0 %v143, 2
        %v155 = vpop.permute.xlu0 %154
        %vm160 = vcmask 15360
        %v161 = vsel %vm160, 0.0, %v149
        %v162 = vsel %vm160, 0.0, %v151
        %v163 = vsel %vm160, 0.0, %v153
        %v164 = vsel %vm160, 0.0, %v155
        %vm165 = vcmask 146432
        %v166 = vsel %vm165, %v161, 0.0
        %v167 = vsel %vm165, %v162, 0.0
        %v168 = vsel %vm165, %v163, 0.0
        %v169 = vsel %vm165, %v164, 0.0
        %v170 = vmul.f32 %v166, 0.125
        %v171 = vmul.f32 %v167, 0.125
        %v172 = vmul.f32 %v168, 0.125
        %v173 = vmul.f32 %v169, 0.125
        %v174 = vmul.f32 %v166, 0.375
        %v175 = vmul.f32 %v167, 0.375
        %v176 = vmul.f32 %v168, 0.375
        %v177 = vmul.f32 %v169, 0.375
        %182 = vrot.lane.b32.xlu0 %v174, 127
        %v183 = vpop.permute.xlu0 %182
        %184 = vrot.lane.b32.xlu0 %v175, 127
        %v185 = vpop.permute.xlu0 %184
        %186 = vrot.lane.b32.xlu0 %v176, 127
        %v187 = vpop.permute.xlu0 %186
        %188 = vrot.lane.b32.xlu0 %v177, 127
        %v189 = vpop.permute.xlu0 %188
        %v194 = vadd.f32 %v170, %v183
        %v195 = vadd.f32 %v171, %v185
        %v196 = vadd.f32 %v172, %v187
        %v197 = vadd.f32 %v173, %v189
        %198 = vrot.lane.b32.xlu0 %v174, 126
        %v199 = vpop.permute.xlu0 %198
        %200 = vrot.lane.b32.xlu0 %v175, 126
        %v201 = vpop.permute.xlu0 %200
        %202 = vrot.lane.b32.xlu0 %v176, 126
        %v203 = vpop.permute.xlu0 %202
        %204 = vrot.lane.b32.xlu0 %v177, 126
        %v205 = vpop.permute.xlu0 %204
        %v210 = vadd.f32 %v194, %v199
        %v211 = vadd.f32 %v195, %v201
        %v212 = vadd.f32 %v196, %v203
        %v213 = vadd.f32 %v197, %v205
        %218 = vrot.lane.b32.xlu0 %v170, 125
        %v219 = vpop.permute.xlu0 %218
        %220 = vrot.lane.b32.xlu0 %v171, 125
        %v221 = vpop.permute.xlu0 %220
        %222 = vrot.lane.b32.xlu0 %v172, 125
        %v223 = vpop.permute.xlu0 %222
        %224 = vrot.lane.b32.xlu0 %v173, 125
        %v225 = vpop.permute.xlu0 %224
        %v230 = vadd.f32 %v210, %v219
        %v231 = vadd.f32 %v211, %v221
        %v232 = vadd.f32 %v212, %v223
        %v233 = vadd.f32 %v213, %v225
        %vm238 = vcmask 1041408
        %v239 = vrot.slane %v230, 6
        %v240 = vrot.slane %v231, 6
        %v241 = vsel %vm238, %v239, %v240
        %v242 = vrot.slane %v232, 6
        %v243 = vrot.slane %v233, 6
        %v244 = vsel %vm238, %v242, %v243
        %v251 = vsel %vm238, 0.0, %v239
        %v252 = vsel %vm238, 0.0, %v242
        %v253 = vsel %vm238, %v240, 0.0
        %v254 = vsel %vm238, %v243, 0.0
        %v255 = vmul.f32 %v251, 0.125
        %v256 = vmul.f32 %v241, 0.125
        %v257 = vmul.f32 %v252, 0.125
        %v258 = vmul.f32 %v244, 0.125
        %v259 = vmul.f32 %v251, 0.375
        %v260 = vmul.f32 %v241, 0.375
        %v261 = vmul.f32 %v253, 0.375
        %v262 = vmul.f32 %v252, 0.375
        %v263 = vmul.f32 %v244, 0.375
        %v264 = vmul.f32 %v254, 0.375
        %vm271 = vcmask 1046528
        %v272 = vrot.slane %v259, 1
        %v273 = vrot.slane %v260, 1
        %v274 = vsel %vm271, %v272, %v273
        %v275 = vrot.slane %v261, 1
        %v276 = vsel %vm271, %v273, %v275
        %v277 = vrot.slane %v262, 1
        %v278 = vrot.slane %v263, 1
        %v279 = vsel %vm271, %v277, %v278
        %v280 = vrot.slane %v264, 1
        %v281 = vsel %vm271, %v278, %v280
        %v286 = vadd.f32 %v255, %v274
        %v287 = vadd.f32 %v256, %v276
        %v288 = vadd.f32 %v257, %v279
        %v289 = vadd.f32 %v258, %v281
        %vm290 = vcmask 1045504
        %v291 = vrot.slane %v259, 2
        %v292 = vrot.slane %v260, 2
        %v293 = vsel %vm290, %v291, %v292
        %v294 = vrot.slane %v261, 2
        %v295 = vsel %vm290, %v292, %v294
        %v296 = vrot.slane %v262, 2
        %v297 = vrot.slane %v263, 2
        %v298 = vsel %vm290, %v296, %v297
        %v299 = vrot.slane %v264, 2
        %v300 = vsel %vm290, %v297, %v299
        %v305 = vadd.f32 %v286, %v293
        %v306 = vadd.f32 %v287, %v295
        %v307 = vadd.f32 %v288, %v298
        %v308 = vadd.f32 %v289, %v300
        %v309 = vmul.f32 %v253, 0.125
        %v310 = vmul.f32 %v254, 0.125
        %vm317 = vcmask 1044480
        %v318 = vrot.slane %v255, 3
        %v319 = vrot.slane %v256, 3
        %v320 = vsel %vm317, %v318, %v319
        %v321 = vrot.slane %v309, 3
        %v322 = vsel %vm317, %v319, %v321
        %v323 = vrot.slane %v257, 3
        %v324 = vrot.slane %v258, 3
        %v325 = vsel %vm317, %v323, %v324
        %v326 = vrot.slane %v310, 3
        %v327 = vsel %vm317, %v324, %v326
        %v332 = vadd.f32 %v305, %v320
        %v333 = vadd.f32 %v306, %v322
        %v334 = vadd.f32 %v307, %v325
        %v335 = vadd.f32 %v308, %v327
        %vm336 = vcmask 130048
        %337 = vst.msk [vmem:[%s137] sm:$0xff] %vm336, %v332
        %338 = vst.msk [vmem:[%s137 + $0x8] sm:$0xff] %vm336, %v333
        %339 = vst.msk [vmem:[%s137 + $0x10] sm:$0xff] %vm336, %v334
        %340 = vst.msk [vmem:[%s137 + $0x18] sm:$0xff] %vm336, %v335
        %s341 = sand.u32 %s52, 1
        %s342 = scalar_lea.sflag [#allocation4], %s341
        %s343 = sand.u32 %s52, 1
        %s344 = smul.addr %s343, 32
        %s345 = scalar_lea.vmem [#allocation5], %s344
        // Predicated region
        $region29: #{tpu_custom_call.1} parent=23 // pred_check
          %p346 = pneg %p62
        $region30: #{tpu_custom_call.1} parent=23 // pred_check_branch
          %348 = sbr.rel (%p346) target = $region32
        $region31: #{tpu_custom_call.1} parent=23 // pred_region
          %s349 = smul.u32 2, %s18
          %351 = vsyncadd %s342, 0
          %s352 = smul.addr %s349, 2
          %s353 = smul.addr %s352, 8
          %s354 = scalar_lea.hbm %s1, %s353
          %s355 = sshll.u32 %s345, 4
          %s356 = int_to_ptr.vmem [resolvable:$true] %s355
          %s357 = sshll.u32 %s354, 4
          %s358 = int_to_ptr.hbm [resolvable:$true] %s357
          %363 = dma.vmem_to_hbm [thread:$0]  %s356, 512, %s358, %s342, 128, 128, 8
        $region32: #{tpu_custom_call.1} parent=23 // pred_fallthru
          _
      $region24: #{tpu_custom_call.1} parent=5 // pred_fallthru
        _
      %p364 = scmp.le.s32.totalorder 2, %s13
      // Predicated region
      $region33: #{tpu_custom_call.1} parent=5 // pred_check
        %p365 = pneg %p364
      $region34: #{tpu_custom_call.1} parent=5 // pred_check_branch
        %367 = sbr.rel (%p365) target = $region36
      $region35: #{tpu_custom_call.1} parent=5 // pred_region
        %s368 = ssub.s32 %s13, 2
        // Predicated region
        $region37: #{tpu_custom_call.1} parent=35 // pred_check
          %p369 = pneg %p68
        $region38: #{tpu_custom_call.1} parent=35 // pred_check_branch
          %371 = sbr.rel (%p369) target = $region40
        $region39: #{tpu_custom_call.1} parent=35 // pred_region
          %s372 = sand.u32 %s53, 1
          %s373 = scalar_lea.sflag [#allocation4], %s372
          %s374 = sand.u32 %s53, 1
          %s375 = smul.addr %s374, 32
          %s376 = scalar_lea.vmem [#allocation5], %s375
          %378 = dma.done %s373, 512
        $region40: #{tpu_custom_call.1} parent=35 // pred_fallthru
          _
      $region36: #{tpu_custom_call.1} parent=5 // pred_fallthru
        _
    $region6: #{tpu_custom_call.1} parent=1 // loop_footer
      %s17 = sadd.s32 1, %s13
    $region7: #{tpu_custom_call.1} parent=1 // loop_footer_branch
      %12 = sbr.rel target = $region3
    $region8: #{tpu_custom_call.1} parent=1 // loop_exit
      _
    %379 = vsyncpa [#allocation3], 1
    %s380 = scalar_lea.sflag [#allocation3], 1
    %381 = vsyncpa %s380, 1
    %382 = vsyncpa [#allocation4], 1
    %s383 = scalar_lea.sflag [#allocation4], 1
    %384 = vsyncpa %s383, 1

</llo_original>
